<compile_context>
chip_gen: v5e
topology: v5e:2x2
jax: 0.10.0
libtpu: 0.0.40
codegen_flags: <defaults>
</compile_context>

<pallas_src>
import functools

import jax
import jax.numpy as jnp
from jax.experimental import pallas as pl
from jax.experimental.pallas import tpu as pltpu

LANE = 128     # lane width (fast axis)
SUBLANE = 8    # sublanes per f32 vreg


def _tpu_tile_params():
    """Return (max_row_tile, ncores) for the current TPU generation.

    max_row_tile keeps double-buffered f32 streams inside the *default*
    scoped-VMEM limit (16 MiB on v5e, 32 MiB on v6e/v7x):
      reduce path : 2 inputs x 2 bufs x (rows*128*4B)
      'none' path : 3 arrays x 2 bufs x (rows*128*4B)
    ncores=2 only on v7x (two TensorCores per chip).
    """
    try:
        kind = jax.devices()[0].device_kind.lower()
    except Exception:
        kind = ""
    if "v5" in kind:
        return 4096, 1          # 'none' path: 3*2*2 MiB = 12 MiB  (16 MiB limit)
    if "v6" in kind:
        return 8192, 1          # 'none' path: 3*2*4 MiB = 24 MiB  (32 MiB limit)
    if "7" in kind:             # v7x
        return 8192, 2
    return 4096, 1              # unknown chip: conservative


def _focus_pow(x, gamma):
    """x**gamma with an integer fast path (VPU multiplies, no exp/log)."""
    if isinstance(gamma, (int, float)) and float(gamma) == int(gamma) and 0 <= int(gamma) <= 16:
        g = int(gamma)
        if g == 0:
            return jnp.ones_like(x)
        r = x
        for _ in range(g - 1):
            r = r * x
        return r
    return x ** gamma


def _focal_terms(p, t, alpha, gamma, binary_targets):
    # PyTorch binary_cross_entropy clamps each log term at -100.
    log_p = jnp.maximum(jnp.log(p), -100.0)
    log_1mp = jnp.maximum(jnp.log(1.0 - p), -100.0)
    bce = -(t * log_p + (1.0 - t) * log_1mp)
    if binary_targets:
        # Exact for t in {0,1}: pt = exp(-bce) = p when t==1, (1-p) when t==0.
        pt = t * p + (1.0 - t) * (1.0 - p)
    else:
        pt = jnp.exp(-bce)
    fl = _focus_pow(1.0 - pt, gamma) * bce
    if alpha != 1.0:          # alpha is hoisted to the wrapper on the reduce path
        fl = alpha * fl
    return fl


def _focal_reduce_kernel(p_ref, t_ref, out_ref, *, gamma, n_rows, block_rows,
                         blocks_per_core, needs_mask, binary_targets):
    c = pl.program_id(0)   # core split ("parallel")
    j = pl.program_id(1)   # row blocks for this core ("arbitrary")

    @pl.when(j == 0)
    def _():
        out_ref[...] = jnp.zeros_like(out_ref)

    p = p_ref[...].astype(jnp.float32)
    t = t_ref[...].astype(jnp.float32)
    fl = _focal_terms(p, t, 1.0, gamma, binary_targets)

    def _accumulate(x):
        # (block_rows,128) -> (block_rows//8, 8, 128): sublane-major regroup
        # (free), then a tree of pure VPU adds down to a single (8,128) vreg
        # accumulated into the resident output block.
        out_ref[...] += jnp.sum(x.reshape(-1, SUBLANE, LANE), axis=0)

    if needs_mask:
        start = (c * blocks_per_core + j) * block_rows

        @pl.when(start + block_rows <= n_rows)
        def _():
            _accumulate(fl)                      # steady state: no masking ops

        @pl.when(start + block_rows > n_rows)
        def _():
            # Last real block of this core and/or fully duplicated clamped
            # blocks: zero rows past the real data.  jnp.where (select) so
            # NaN garbage from the ragged tail cannot leak.
            row_ids = jax.lax.broadcasted_iota(jnp.int32, fl.shape, 0)
            _accumulate(jnp.where(row_ids < (n_rows - start), fl, 0.0))
    else:
        _accumulate(fl)


def _focal_elem_kernel(p_ref, t_ref, o_ref, *, alpha, gamma, binary_targets):
    p = p_ref[...].astype(jnp.float32)
    t = t_ref[...].astype(jnp.float32)
    o_ref[...] = _focal_terms(p, t, alpha, gamma, binary_targets).astype(o_ref.dtype)


def focal_loss(predict, targets, alpha=0.8, gamma=2, reduction="mean",
               binary_targets=False):
    """Pallas TPU focal loss.  predict/targets: same shape, values in [0, 1]."""
    assert predict.shape == targets.shape
    orig_shape = predict.shape
    n = 1
    for d in orig_shape:
        n *= d

    max_row_tile, ncores = _tpu_tile_params()

    pflat = predict.reshape(-1)
    tflat = targets.reshape(-1)

    # Pad up to one (8,128) vreg (<=1023 elems) so the flat array reshapes to
    # (rows, 128) with rows a multiple of 8.  Pad value (p=1, t=1) gives
    # BCE = 0 -> focal term exactly 0, so reductions are unaffected.
    pad = (-n) % (SUBLANE * LANE)
    if pad:
        pflat = jnp.pad(pflat, (0, pad), constant_values=1)
        tflat = jnp.pad(tflat, (0, pad), constant_values=1)

    rows = (n + pad) // LANE
    p2 = pflat.reshape(rows, LANE)
    t2 = tflat.reshape(rows, LANE)

    block_rows = rows if rows <= max_row_tile else max_row_tile
    total_blocks = pl.cdiv(rows, block_rows)

    if reduction in ("mean", "sum"):
        blocks_per_core = pl.cdiv(total_blocks, ncores)
        needs_mask = (ncores * blocks_per_core * block_rows) != rows

        def in_map(c, j):
            b = c * blocks_per_core + j
            return (jnp.minimum(b, total_blocks - 1), 0)

        kernel = functools.partial(
            _focal_reduce_kernel, gamma=gamma, n_rows=rows,
            block_rows=block_rows, blocks_per_core=blocks_per_core,
            needs_mask=needs_mask, binary_targets=binary_targets)

        # TODO(synk): on v7x, if an xprof trace shows only one TensorCore
        # active, switch the leading axis to pltpu.CORE_PARALLEL (or
        # pl.core_map); if it shows exposed input DMA at this tile size, add
        # pipeline_mode=pl.Buffered(3) to the two input BlockSpecs.
        partials = pl.pallas_call(
            kernel,
            out_shape=jax.ShapeDtypeStruct((ncores * SUBLANE, LANE), jnp.float32),
            grid_spec=pltpu.PrefetchScalarGridSpec(
                num_scalar_prefetch=0,
                grid=(ncores, blocks_per_core),
                in_specs=[pl.BlockSpec((block_rows, LANE), in_map),
                          pl.BlockSpec((block_rows, LANE), in_map)],
                out_specs=pl.BlockSpec((SUBLANE, LANE), lambda c, j: (c, 0))),
            compiler_params=pltpu.CompilerParams(
                dimension_semantics=("parallel", "arbitrary")),
        )(p2, t2)

        # alpha hoisted out of the kernel (one fewer VPU mul/element); the
        # final reduce over (ncores*8, 128) f32 is a negligible XLA op.
        total = jnp.sum(partials) * jnp.float32(alpha)
        if reduction == "mean":
            return total / jnp.float32(n)
        return total

    elif reduction == "none":
        kernel = functools.partial(_focal_elem_kernel, alpha=float(alpha),
                                   gamma=gamma, binary_targets=binary_targets)
        out = pl.pallas_call(
            kernel,
            out_shape=jax.ShapeDtypeStruct((rows, LANE), predict.dtype),
            grid_spec=pltpu.PrefetchScalarGridSpec(
                num_scalar_prefetch=0,
                grid=(total_blocks,),
                in_specs=[pl.BlockSpec((block_rows, LANE), lambda i: (i, 0)),
                          pl.BlockSpec((block_rows, LANE), lambda i: (i, 0))],
                out_specs=pl.BlockSpec((block_rows, LANE), lambda i: (i, 0))),
            compiler_params=pltpu.CompilerParams(
                dimension_semantics=("parallel",)),
        )(p2, t2)
        out_flat = out.reshape(-1)
        if pad:
            out_flat = out_flat[:n]
        return out_flat.reshape(orig_shape)
    else:
        raise ValueError(f"unknown reduction: {reduction}")


def _reference_focal_loss(predict, targets, alpha=0.8, gamma=2, reduction="mean"):
    p = predict.astype(jnp.float32)
    t = targets.astype(jnp.float32)
    log_p = jnp.maximum(jnp.log(p), -100.0)
    log_1mp = jnp.maximum(jnp.log(1.0 - p), -100.0)
    bce = -(t * log_p + (1.0 - t) * log_1mp)
    pt = jnp.exp(-bce)
    fl = alpha * (1.0 - pt) ** gamma * bce
    if reduction == "mean":
        return fl.mean()
    elif reduction == "sum":
        return fl.sum()
    return fl


if __name__ == "__main__":
    key = jax.random.PRNGKey(0)
    k1, k2 = jax.random.split(key)

    # predict: probabilities in (0, 1); targets: binary maps. NCHW = [2, 4, 16, 16].
    B, C, H, W = 2, 4, 16, 16
    predict = jax.nn.sigmoid(jax.random.normal(k1, (B, C, H, W), jnp.float32))
    targets = (jax.random.uniform(k2, (B, C, H, W)) > 0.5).astype(jnp.float32)

    out = jax.block_until_ready(
        focal_loss(predict, targets, alpha=0.8, gamma=2, reduction="mean"))
    ref = _reference_focal_loss(predict, targets, alpha=0.8, gamma=2, reduction="mean")
    assert jnp.allclose(out, ref, rtol=1e-5, atol=1e-6), (out, ref)

    # also exercise 'sum' and 'none' paths
    out_sum = jax.block_until_ready(focal_loss(predict, targets, reduction="sum"))
    ref_sum = _reference_focal_loss(predict, targets, reduction="sum")
    assert jnp.allclose(out_sum, ref_sum, rtol=1e-5, atol=1e-5), (out_sum, ref_sum)

    out_none = jax.block_until_ready(focal_loss(predict, targets, reduction="none"))
    ref_none = _reference_focal_loss(predict, targets, reduction="none")
    assert out_none.shape == (B, C, H, W)
    assert jnp.allclose(out_none, ref_none, rtol=1e-5, atol=1e-6)

    # ragged size (210 elems, not a multiple of 128): exercises vreg padding
    # plus the gated in-kernel tail/duplicate-block masking on the reduce path.
    k3, k4 = jax.random.split(k2)
    pr = jax.nn.sigmoid(jax.random.normal(k3, (2, 3, 7, 5), jnp.float32))
    tr = (jax.random.uniform(k4, (2, 3, 7, 5)) > 0.5).astype(jnp.float32)
    out_r = jax.block_until_ready(focal_loss(pr, tr, reduction="mean"))
    ref_r = _reference_focal_loss(pr, tr, reduction="mean")
    assert jnp.allclose(out_r, ref_r, rtol=1e-5, atol=1e-6), (out_r, ref_r)

    # flag-gated binary-targets fast path (valid here since targets are 0/1)
    out_b = jax.block_until_ready(
        focal_loss(predict, targets, reduction="mean", binary_targets=True))
    assert jnp.allclose(out_b, ref, rtol=1e-4, atol=1e-5), (out_b, ref)

    print("KERNEL_OK")
</pallas_src>

<mosaic_0001>
module attributes {stable_mosaic.version = 11 : i64} {
  func.func @_focal_reduce_kernel(%arg0: i32, %arg1: i32, %arg2: memref<16x128xf32, #tpu.memory_space<vmem>>, %arg3: memref<16x128xf32, #tpu.memory_space<vmem>>, %arg4: memref<8x128xf32, #tpu.memory_space<vmem>>) attributes {dimension_semantics = [#tpu.dimension_semantics<parallel>, #tpu.dimension_semantics<arbitrary>], iteration_bounds = array<i64: 1, 1>, scalar_prefetch = 0 : i64, scratch_operands = 0 : i64, tpu.core_type = #tpu.core_type<tc>, window_params = [{transform_indices = @transform_0, window_bounds = array<i64: 16, 128>}, {transform_indices = @transform_1, window_bounds = array<i64: 16, 128>}, {transform_indices = @transform_2, window_bounds = array<i64: 8, 128>}]} {
    %c0_i32 = arith.constant 0 : i32
    %0 = arith.cmpi eq, %arg1, %c0_i32 : i32
    %1 = arith.extui %0 : i1 to i32
    %c0_i32_0 = arith.constant 0 : i32
    %2 = arith.cmpi ne, %1, %c0_i32_0 : i32
    scf.if %2 {
      %cst_15 = arith.constant 0.000000e+00 : f32
      %32 = vector.broadcast %cst_15 : f32 to vector<8x128xf32>
      %c0_16 = arith.constant 0 : index
      %c0_17 = arith.constant 0 : index
      %33 = vector.load %arg4[%c0_16, %c0_17] : memref<8x128xf32, #tpu.memory_space<vmem>>, vector<8x128xf32>
      tpu.vector_store %arg4[%c0_16, %c0_17], %32 {strides = array<i32>} : memref<8x128xf32, #tpu.memory_space<vmem>>, vector<8x128xf32>,
    } else {
    }
    %c0 = arith.constant 0 : index
    %c0_1 = arith.constant 0 : index
    %3 = vector.load %arg2[%c0, %c0_1] : memref<16x128xf32, #tpu.memory_space<vmem>>, vector<16x128xf32>
    %c0_2 = arith.constant 0 : index
    %c0_3 = arith.constant 0 : index
    %4 = vector.load %arg3[%c0_2, %c0_3] : memref<16x128xf32, #tpu.memory_space<vmem>>, vector<16x128xf32>
    %5 = math.log %3 : vector<16x128xf32>
    %cst = arith.constant -1.000000e+02 : f32
    %6 = vector.broadcast %cst : f32 to vector<16x128xf32>
    %7 = arith.maximumf %5, %6 : vector<16x128xf32>
    %cst_4 = arith.constant 1.000000e+00 : f32
    %8 = vector.broadcast %cst_4 : f32 to vector<16x128xf32>
    %9 = arith.subf %8, %3 : vector<16x128xf32>
    %10 = math.log %9 : vector<16x128xf32>
    %cst_5 = arith.constant -1.000000e+02 : f32
    %11 = vector.broadcast %cst_5 : f32 to vector<16x128xf32>
    %12 = arith.maximumf %10, %11 : vector<16x128xf32>
    %13 = arith.mulf %4, %7 : vector<16x128xf32>
    %cst_6 = arith.constant 1.000000e+00 : f32
    %14 = vector.broadcast %cst_6 : f32 to vector<16x128xf32>
    %15 = arith.subf %14, %4 : vector<16x128xf32>
    %16 = arith.mulf %15, %12 : vector<16x128xf32>
    %17 = arith.addf %13, %16 : vector<16x128xf32>
    %cst_7 = arith.constant 0.000000e+00 : f32
    %18 = vector.broadcast %cst_7 : f32 to vector<16x128xf32>
    %19 = arith.subf %18, %17 : vector<16x128xf32>
    %cst_8 = arith.constant 0.000000e+00 : f32
    %20 = vector.broadcast %cst_8 : f32 to vector<16x128xf32>
    %21 = arith.subf %20, %19 : vector<16x128xf32>
    %22 = math.exp %21 : vector<16x128xf32>
    %cst_9 = arith.constant 1.000000e+00 : f32
    %23 = vector.broadcast %cst_9 : f32 to vector<16x128xf32>
    %24 = arith.subf %23, %22 : vector<16x128xf32>
    %25 = arith.mulf %24, %24 : vector<16x128xf32>
    %26 = arith.mulf %25, %19 : vector<16x128xf32>
    %c0_10 = arith.constant 0 : index
    %c0_11 = arith.constant 0 : index
    %27 = vector.load %arg4[%c0_10, %c0_11] : memref<8x128xf32, #tpu.memory_space<vmem>>, vector<8x128xf32>
    %28 = vector.shape_cast %26 : vector<16x128xf32> to vector<2x8x128xf32>
    %cst_12 = arith.constant dense<0.000000e+00> : vector<8x128xf32>
    %29 = vector.multi_reduction <add>, %28, %cst_12 [0] : vector<2x8x128xf32> to vector<8x128xf32>
    %30 = arith.addf %27, %29 : vector<8x128xf32>
    %c0_13 = arith.constant 0 : index
    %c0_14 = arith.constant 0 : index
    %31 = vector.load %arg4[%c0_13, %c0_14] : memref<8x128xf32, #tpu.memory_space<vmem>>, vector<8x128xf32>
    tpu.vector_store %arg4[%c0_13, %c0_14], %30 {strides = array<i32>} : memref<8x128xf32, #tpu.memory_space<vmem>>, vector<8x128xf32>,
    return
  }
  func.func @transform_0(%arg0: i32, %arg1: i32) -> (i32, i32) {
    %c1_i32 = arith.constant 1 : i32
    %0 = arith.muli %arg0, %c1_i32 : i32
    %1 = arith.addi %0, %arg1 : i32
    %c0_i32 = arith.constant 0 : i32
    %2 = arith.minsi %1, %c0_i32 : i32
    %c0_i32_0 = arith.constant 0 : i32
    %c0_i32_1 = arith.constant 0 : i32
    return %2, %c0_i32_0 : i32, i32
  }
  func.func @transform_1(%arg0: i32, %arg1: i32) -> (i32, i32) {
    %c1_i32 = arith.constant 1 : i32
    %0 = arith.muli %arg0, %c1_i32 : i32
    %1 = arith.addi %0, %arg1 : i32
    %c0_i32 = arith.constant 0 : i32
    %2 = arith.minsi %1, %c0_i32 : i32
    %c0_i32_0 = arith.constant 0 : i32
    %c0_i32_1 = arith.constant 0 : i32
    return %2, %c0_i32_0 : i32, i32
  }
  func.func @transform_2(%arg0: i32, %arg1: i32) -> (i32, i32) {
    %c0_i32 = arith.constant 0 : i32
    %c0_i32_0 = arith.constant 0 : i32
    return %arg0, %c0_i32 : i32, i32
  }
}

</mosaic_0001>

<llo_original>
// kernel: tpu_custom_call.1
$region0: #{tpu_custom_call.1}
  #allocation0 [shape = 'u32[]', space=smem, size = 0x4, offset = 0x4, fixed_abs, tag = 'smem constant byte address 0x4 - core index']
  #allocation1 [shape = 'u32[72,128]{1,0:T(1,128)}', space=vmem, size = 0x9000, scoped, tag = 'internal scratch']
  %s0 = inlined_call_operand.hbm [shape: f32[16,128], index: 0, kind: input, shape index: {}]
  %s1 = inlined_call_operand.hbm [shape: f32[16,128], index: 1, kind: input, shape index: {}]
  %s2 = inlined_call_operand.hbm [shape: f32[8,128], index: 2, kind: output, shape index: {}]
  %s3 = sld [smem:[#allocation0]]
  $region30: #{tpu_custom_call.1} parent=0
    _
  %s5 = ssub.s32 1, %s3
  %s6 = scalar_select 0, %s5, %s3
  $region1: #{tpu_custom_call.1} parent=0
    #allocation2 [shape = 'u8[8192]{0}', space=vmem, size = 0x2000, scoped, tag = 'input window, operand 0, single buffered']
    #allocation3 [shape = 's32[1]{0}', space=sflag, size = 0x4, scoped, tag = 'scoped memory for tpu_custom_call.1']
    #allocation4 [shape = 's32[1]{0}', space=sflag, size = 0x4, scoped, tag = 'scoped memory for tpu_custom_call.1']
    #allocation5 [shape = 'u8[8192]{0}', space=vmem, size = 0x2000, scoped, tag = 'input window, operand 1, single buffered']
    #allocation6 [shape = 's32[1]{0}', space=sflag, size = 0x4, scoped, tag = 'scoped memory for tpu_custom_call.1']
    #allocation7 [shape = 'u8[4096]{0}', space=vmem, size = 0x1000, scoped, tag = 'output window, operand 0, single buffered']
    %7 = vsyncpa [#allocation3], 0
    %8 = vsyncpa [#allocation6], 0
    %9 = vsyncpa [#allocation4], 0
    // Predicated region
    $region2: #{tpu_custom_call.1} parent=1 // pred_check
      _
    $region3: #{tpu_custom_call.1} parent=1 // pred_check_branch
      %11 = sbr.rel (0) target = $region5
    $region4: #{tpu_custom_call.1} parent=1 // pred_region
      %s12 = sadd.s32 0, 0
      %p13 = scmp.lt.s32.totalorder %s12, 0
      %s14 = scalar_select %p13, %s12, 0
      %s15 = smul.u32 2, %s14
      %17 = vsyncadd [#allocation3], 0
      %s18 = smul.addr %s15, 8
      %s19 = scalar_lea.hbm %s0, %s18
      %s20 = sshll.u32 %s19, 4
      %s21 = int_to_ptr.hbm [resolvable:$true] %s20
      %s22 = sshll.u32 [#allocation2], 4
      %s23 = int_to_ptr.vmem [resolvable:$true] %s22
      %28 = dma.hbm_to_vmem [thread:$0]  %s21, 256, %s23, [#allocation3], 128, 128, 8
    $region5: #{tpu_custom_call.1} parent=1 // pred_fallthru
      _
    // Predicated region
    $region6: #{tpu_custom_call.1} parent=1 // pred_check
      _
    $region7: #{tpu_custom_call.1} parent=1 // pred_check_branch
      %30 = sbr.rel (0) target = $region9
    $region8: #{tpu_custom_call.1} parent=1 // pred_region
      %s31 = sadd.s32 0, 0
      %p32 = scmp.lt.s32.totalorder %s31, 0
      %s33 = scalar_select %p32, %s31, 0
      %s34 = smul.u32 2, %s33
      %36 = vsyncadd [#allocation6], 0
      %s37 = smul.addr %s34, 8
      %s38 = scalar_lea.hbm %s1, %s37
      %s39 = sshll.u32 %s38, 4
      %s40 = int_to_ptr.hbm [resolvable:$true] %s39
      %s41 = sshll.u32 [#allocation5], 4
      %s42 = int_to_ptr.vmem [resolvable:$true] %s41
      %47 = dma.hbm_to_vmem [thread:$0]  %s40, 256, %s42, [#allocation6], 128, 128, 8
    $region9: #{tpu_custom_call.1} parent=1 // pred_fallthru
      _
    // Predicated region
    $region10: #{tpu_custom_call.1} parent=1 // pred_check
      _
    $region11: #{tpu_custom_call.1} parent=1 // pred_check_branch
      %49 = sbr.rel (0) target = $region13
    $region12: #{tpu_custom_call.1} parent=1 // pred_region
      %51 = dma.done [#allocation3], 256
    $region13: #{tpu_custom_call.1} parent=1 // pred_fallthru
      _
    // Predicated region
    $region14: #{tpu_custom_call.1} parent=1 // pred_check
      _
    $region15: #{tpu_custom_call.1} parent=1 // pred_check_branch
      %53 = sbr.rel (0) target = $region17
    $region16: #{tpu_custom_call.1} parent=1 // pred_region
      %55 = dma.done [#allocation6], 256
    $region17: #{tpu_custom_call.1} parent=1 // pred_fallthru
      _
    %s56 = sadd.s32 0, 0
    %p57 = scmp.lt.s32.totalorder %s56, 0
    %s58 = scalar_select %p57, %s56, 0
    %s59 = smul.u32 2, %s58
    %s60 = sadd.s32 0, 0
    %p61 = scmp.lt.s32.totalorder %s60, 0
    %s62 = scalar_select %p61, %s60, 0
    %s63 = smul.u32 2, %s62
    %p64 = scmp.eq.s32.totalorder 0, 0
    // Predicated region
    $region18: #{tpu_custom_call.1} parent=1 // pred_check
      %p65 = pneg %p64
    $region19: #{tpu_custom_call.1} parent=1 // pred_check_branch
      %67 = sbr.rel (%p65) target = $region21
    $region20: #{tpu_custom_call.1} parent=1 // pred_region
      %68 = vst [vmem:[#allocation7] sm:$0xff] 0.0
    $region21: #{tpu_custom_call.1} parent=1 // pred_fallthru
      _
    %v69 = vld [vmem:[#allocation2] sm:$0xff]
    %v70 = vld [vmem:[#allocation2 + $0x8] sm:$0xff]
    %v71 = vld [vmem:[#allocation5] sm:$0xff]
    %v72 = vld [vmem:[#allocation5 + $0x8] sm:$0xff]
    %v73 = vlog2.pop %v69
    %v74 = vmul.f32 %v73, 0.6931472
    %v75 = vlog2.pop %v70
    %v76 = vmul.f32 %v75, 0.6931472
    %v77 = vmax.f32 %v74, -100.0
    %v78 = vmax.f32 %v76, -100.0
    %v79 = vsub.f32 1.0, %v69
    %v80 = vsub.f32 1.0, %v70
    %v81 = vlog2.pop %v79
    %v82 = vmul.f32 %v81, 0.6931472
    %v83 = vlog2.pop %v80
    %v84 = vmul.f32 %v83, 0.6931472
    %v85 = vmax.f32 %v82, -100.0
    %v86 = vmax.f32 %v84, -100.0
    %v87 = vmul.f32 %v71, %v77
    %v88 = vmul.f32 %v72, %v78
    %v89 = vsub.f32 1.0, %v71
    %v90 = vsub.f32 1.0, %v72
    %v91 = vmul.f32 %v89, %v85
    %v92 = vmul.f32 %v90, %v86
    %v93 = vadd.f32 %v87, %v91
    %v94 = vadd.f32 %v88, %v92
    %v95 = vsub.f32 0.0, %v93
    %v96 = vsub.f32 0.0, %v94
    %v97 = vsub.f32 0.0, %v95
    %v98 = vsub.f32 0.0, %v96
    %v99 = vmul.f32 %v97, 1.442695
    %v100 = vpow.pop %v99
    %v101 = vmul.f32 %v98, 1.442695
    %v102 = vpow.pop %v101
    %v103 = vsub.f32 1.0, %v100
    %v104 = vsub.f32 1.0, %v102
    %v105 = vmul.f32 %v103, %v103
    %v106 = vmul.f32 %v104, %v104
    %v107 = vmul.f32 %v105, %v95
    %v108 = vmul.f32 %v106, %v96
    %v109 = vld [vmem:[#allocation7] sm:$0xff]
    %v110 = vadd.f32 %v107, %v108
    %v111 = vadd.f32 %v109, %v110
    %112 = vst [vmem:[#allocation7] sm:$0xff] %v111
    // Predicated region
    $region22: #{tpu_custom_call.1} parent=1 // pred_check
      _
    $region23: #{tpu_custom_call.1} parent=1 // pred_check_branch
      %114 = sbr.rel (0) target = $region25
    $region24: #{tpu_custom_call.1} parent=1 // pred_region
      %116 = vsyncadd [#allocation4], 0
      %s118 = sshll.u32 [#allocation7], 4
      %s119 = int_to_ptr.vmem [resolvable:$true] %s118
      %s120 = sshll.u32 %s2, 4
      %s121 = int_to_ptr.hbm [resolvable:$true] %s120
      %123 = dma.vmem_to_hbm [thread:$0]  %s119, 128, %s121, [#allocation4]
    $region25: #{tpu_custom_call.1} parent=1 // pred_fallthru
      _
    // Predicated region
    $region26: #{tpu_custom_call.1} parent=1 // pred_check
      _
    $region27: #{tpu_custom_call.1} parent=1 // pred_check_branch
      %125 = sbr.rel (0) target = $region29
    $region28: #{tpu_custom_call.1} parent=1 // pred_region
      %127 = dma.done [#allocation4], 128
    $region29: #{tpu_custom_call.1} parent=1 // pred_fallthru
      _
    %128 = vsyncpa [#allocation3], 1
    %129 = vsyncpa [#allocation6], 1
    %130 = vsyncpa [#allocation4], 1

</llo_original>
